<compile_context>
chip_gen: v5e
topology: v5e:2x2
jax: 0.10.0
libtpu: 0.0.40
codegen_flags: <defaults>
</compile_context>

<pallas_src>
from functools import partial

import jax
import jax.numpy as jnp
from jax.experimental import pallas as pl
from jax.experimental.pallas import tpu as pltpu


def _cdiv(a: int, b: int) -> int:
    return -(-a // b)


def _round_up(a: int, b: int) -> int:
    return _cdiv(a, b) * b


def _tv_kernel(x_ref, hsum_ref, wsum_ref, *, h, w, tbc, steps_per_split, bc,
               mask_rows):
    """One grid step handles a (tbc, h*w) slab of flattened planes.

    x_ref:    (tbc, h*w) input tile (tbc whole planes, lane-dense)
    hsum_ref: (8, h*w) f32 accumulator for sum((x[r+1,c] - x[r,c])**2)
    wsum_ref: (8, h*w) f32 accumulator for sum((x[r,c+1] - x[r,c])**2)
    """
    step = pl.program_id(1)
    hw = h * w

    @pl.when(step == 0)
    def _():
        hsum_ref[...] = jnp.zeros_like(hsum_ref)
        wsum_ref[...] = jnp.zeros_like(wsum_ref)

    # Upcast in-kernel (halves HBM reads for bf16 inputs; v5e VPU has no bf16).
    x = x_ref[...].astype(jnp.float32)

    if mask_rows:
        # Ragged coverage: zero planes past bc (OOB tile contents are
        # undefined); diffs within all-zero rows contribute nothing.
        plane0 = (pl.program_id(0) * steps_per_split + step) * tbc
        row = jax.lax.broadcasted_iota(jnp.int32, (tbc, 1), 0)
        x = jnp.where(row + plane0 < bc, x, 0.0)

    # Lane masks from a single (1, hw) iota row (cheap; broadcast in the muls).
    col = jax.lax.broadcasted_iota(jnp.int32, (1, hw), 1)
    mask_w = (col % w != (w - 1)).astype(jnp.float32)      # not last column
    mask_h = (col < (h - 1) * w).astype(jnp.float32)       # not last row

    # Neighbours via XLU rotations: positive shift moves data toward higher
    # indices, so shift = hw - k gives y[i] = x[i + k].
    nxt_w = pltpu.roll(x, shift=(hw - 1) % hw, axis=1)     # x[i + 1]
    nxt_h = pltpu.roll(x, shift=(hw - w) % hw, axis=1)     # x[i + w]

    d_w = (nxt_w - x) * mask_w
    d_h = (nxt_h - x) * mask_h

    def fold8(v):
        # (tbc, hw) -> (8, hw): pure cross-vreg VALU adds, no sublane reduce.
        if tbc == 8:
            return v
        return v.reshape(tbc // 8, 8, hw).sum(axis=0)

    hsum_ref[...] += fold8(d_h * d_h)
    wsum_ref[...] += fold8(d_w * d_w)


def tv_loss(y_pred: jax.Array) -> jax.Array:
    """Pallas implementation of TVLoss.forward (returns a scalar)."""
    b, c, h, w = y_pred.shape
    bc = b * c
    hw = h * w
    x = y_pred.reshape(bc, hw)               # lane-dense flattened planes

    itemsize = jnp.dtype(y_pred.dtype).itemsize
    # Packed sublane tile: 8 rows for 4-byte, 16 for 2-byte, 32 for 1-byte.
    sub_min = max(8, 32 // itemsize)
    plane_bytes = hw * itemsize

    # VMEM budget: double-buffered input tiles + two (8, hw) f32 accumulators
    # (conservatively counted double-buffered) must fit under a scoped limit
    # that is safe on every generation including v7x (64 MiB physical VMEM).
    vmem_limit = 32 * 1024 * 1024
    budget = vmem_limit - 4 * 1024 * 1024            # headroom for scratch
    acc_bytes = 2 * 2 * 8 * hw * 4
    input_budget = budget - acc_bytes
    if input_budget < 2 * sub_min * plane_bytes:
        # TODO(synk): add an hw-tiled path with a one-row/one-column halo for
        # planes too large for the plane-per-sublane-row layout.
        raise NotImplementedError(
            f"tv_loss: plane of {plane_bytes} bytes is too large for the VMEM "
            "budget of this layout; hw-tiled halo path not implemented.")

    # ~8 MiB input tiles keep the ~0.35 us per-step overhead well under the
    # HBM stream time even at v7x's 3.2 TB/s.
    target_bytes = 8 * 1024 * 1024
    tbc = min(target_bytes // plane_bytes, input_budget // (2 * plane_bytes))
    tbc = max(sub_min, (tbc // sub_min) * sub_min)   # round DOWN to sublane tile
    tbc = min(tbc, _round_up(bc, sub_min))           # never bigger than the work

    # Two-way split of the plane range whenever there are >= 2 minimum tiles of
    # work so both TensorCores of a v7x chip get work; no-op on v5e/v6e.
    num_splits = 2 if bc >= 2 * sub_min else 1
    if num_splits == 2:
        tbc = min(tbc, max(sub_min, _round_up(_cdiv(bc, 2), sub_min)))

    steps_per_split = _cdiv(_cdiv(bc, tbc), num_splits)
    covered = num_splits * steps_per_split * tbc
    mask_rows = covered != bc      # ragged tail handled in-kernel (no jnp.pad)

    kernel = partial(_tv_kernel, h=h, w=w, tbc=tbc,
                     steps_per_split=steps_per_split, bc=bc,
                     mask_rows=mask_rows)

    hsum, wsum = pl.pallas_call(
        kernel,
        out_shape=(
            jax.ShapeDtypeStruct((num_splits * 8, hw), jnp.float32),
            jax.ShapeDtypeStruct((num_splits * 8, hw), jnp.float32),
        ),
        grid_spec=pltpu.PrefetchScalarGridSpec(
            num_scalar_prefetch=0,
            grid=(num_splits, steps_per_split),
            in_specs=[
                pl.BlockSpec((tbc, hw), lambda s, i: (s * steps_per_split + i, 0)),
            ],
            out_specs=[
                pl.BlockSpec((8, hw), lambda s, i: (s, 0)),
                pl.BlockSpec((8, hw), lambda s, i: (s, 0)),
            ],
        ),
        compiler_params=pltpu.CompilerParams(
            dimension_semantics=("parallel", "arbitrary"),
            vmem_limit_bytes=vmem_limit,
        ),
    )(x)

    # Single cross-lane reduction, done once in the wrapper.
    # (h==1 or w==1 divides by zero exactly like the PyTorch reference.)
    h_variance = jnp.sum(hsum) / (b * c * (h - 1) * w)
    w_variance = jnp.sum(wsum) / (b * c * h * (w - 1))
    return w_variance + h_variance


def tv_loss_ref(y_pred: jax.Array) -> jax.Array:
    """Plain-JAX reference mirroring the PyTorch module exactly."""
    b, c, h, w = y_pred.shape
    h_delta = y_pred[:, :, 1:, :] - y_pred[:, :, :-1, :]
    w_delta = y_pred[:, :, :, 1:] - y_pred[:, :, :, :-1]
    h_variance = jnp.sum(h_delta.astype(jnp.float32) ** 2) / (b * c * (h - 1) * w)
    w_variance = jnp.sum(w_delta.astype(jnp.float32) ** 2) / (b * c * h * (w - 1))
    return w_variance + h_variance


if __name__ == "__main__":
    key = jax.random.PRNGKey(0)
    cases = [
        (2, 4, 16, 16),   # primary shape: tile covers bc exactly
        (2, 3, 16, 24),   # w not a power of two, ragged bc -> in-kernel row mask
        (4, 4, 16, 16),   # enough planes to exercise the 2-way parallel split
    ]
    for idx, shape in enumerate(cases):
        k = jax.random.fold_in(key, idx)
        y_pred = jax.random.normal(k, shape, dtype=jnp.float32)
        out = jax.block_until_ready(tv_loss(y_pred))
        ref = jax.block_until_ready(tv_loss_ref(y_pred))
        assert out.shape == (), f"{shape}: expected scalar, got {out.shape}"
        assert jnp.allclose(out, ref, rtol=1e-5, atol=1e-5), (shape, out, ref)
    print("KERNEL_OK")
</pallas_src>

<mosaic_0001>
module attributes {stable_mosaic.version = 11 : i64} {
  func.func @_tv_kernel(%arg0: i32, %arg1: i32, %arg2: memref<8x256xf32, #tpu.memory_space<vmem>>, %arg3: memref<8x256xf32, #tpu.memory_space<vmem>>, %arg4: memref<8x256xf32, #tpu.memory_space<vmem>>) attributes {dimension_semantics = [#tpu.dimension_semantics<parallel>, #tpu.dimension_semantics<arbitrary>], iteration_bounds = array<i64: 1, 1>, scalar_prefetch = 0 : i64, scratch_operands = 0 : i64, tpu.core_type = #tpu.core_type<tc>, window_params = [{transform_indices = @transform_0, window_bounds = array<i64: 8, 256>}, {transform_indices = @transform_1, window_bounds = array<i64: 8, 256>}, {transform_indices = @transform_2, window_bounds = array<i64: 8, 256>}]} {
    %c0_i32 = arith.constant 0 : i32
    %0 = arith.cmpi eq, %arg1, %c0_i32 : i32
    %1 = arith.extui %0 : i1 to i32
    %c0_i32_0 = arith.constant 0 : i32
    %2 = arith.cmpi ne, %1, %c0_i32_0 : i32
    scf.if %2 {
      %cst = arith.constant 0.000000e+00 : f32
      %45 = vector.broadcast %cst : f32 to vector<8x256xf32>
      %c0_15 = arith.constant 0 : index
      %c0_16 = arith.constant 0 : index
      %46 = vector.load %arg3[%c0_15, %c0_16] : memref<8x256xf32, #tpu.memory_space<vmem>>, vector<8x256xf32>
      tpu.vector_store %arg3[%c0_15, %c0_16], %45 {strides = array<i32>} : memref<8x256xf32, #tpu.memory_space<vmem>>, vector<8x256xf32>,
      %cst_17 = arith.constant 0.000000e+00 : f32
      %47 = vector.broadcast %cst_17 : f32 to vector<8x256xf32>
      %c0_18 = arith.constant 0 : index
      %c0_19 = arith.constant 0 : index
      %48 = vector.load %arg4[%c0_18, %c0_19] : memref<8x256xf32, #tpu.memory_space<vmem>>, vector<8x256xf32>
      tpu.vector_store %arg4[%c0_18, %c0_19], %47 {strides = array<i32>} : memref<8x256xf32, #tpu.memory_space<vmem>>, vector<8x256xf32>,
    } else {
    }
    %c0 = arith.constant 0 : index
    %c0_1 = arith.constant 0 : index
    %3 = vector.load %arg2[%c0, %c0_1] : memref<8x256xf32, #tpu.memory_space<vmem>>, vector<8x256xf32>
    %4 = tpu.iota {dimensions = array<i32: 1>} : vector<1x256xi32>
    %c16_i32 = arith.constant 16 : i32
    %c0_i32_2 = arith.constant 0 : i32
    %5 = arith.cmpi eq, %c16_i32, %c0_i32_2 : i32
    %c1_i32 = arith.constant 1 : i32
    %6 = arith.select %5, %c1_i32, %c16_i32 : i32
    %7 = vector.broadcast %6 : i32 to vector<1x256xi32>
    %8 = arith.remsi %4, %7 : vector<1x256xi32>
    %c0_i32_3 = arith.constant 0 : i32
    %9 = vector.broadcast %c0_i32_3 : i32 to vector<1x256xi32>
    %10 = arith.cmpi ne, %8, %9 : vector<1x256xi32>
    %c0_i32_4 = arith.constant 0 : i32
    %11 = vector.broadcast %c0_i32_4 : i32 to vector<1x256xi32>
    %12 = arith.cmpi slt, %8, %11 : vector<1x256xi32>
    %c0_i32_5 = arith.constant 0 : i32
    %13 = arith.cmpi slt, %6, %c0_i32_5 : i32
    %14 = vector.broadcast %13 : i1 to vector<1x256xi1>
    %15 = vector.broadcast %14 : vector<1x256xi1> to vector<1x256xi1>
    %16 = arith.xori %12, %15 : vector<1x256xi1>
    %17 = arith.andi %16, %10 : vector<1x256xi1>
    %18 = vector.broadcast %6 : i32 to vector<1x256xi32>
    %19 = arith.addi %8, %18 : vector<1x256xi32>
    %20 = arith.select %17, %19, %8 : vector<1x256xi1>, vector<1x256xi32>
    %c15_i32 = arith.constant 15 : i32
    %21 = vector.broadcast %c15_i32 : i32 to vector<1x256xi32>
    %22 = arith.cmpi ne, %20, %21 : vector<1x256xi32>
    %23 = arith.extui %22 : vector<1x256xi1> to vector<1x256xi32>
    %24 = arith.sitofp %23 : vector<1x256xi32> to vector<1x256xf32>
    %c240_i32 = arith.constant 240 : i32
    %25 = vector.broadcast %c240_i32 : i32 to vector<1x256xi32>
    %26 = arith.cmpi slt, %4, %25 : vector<1x256xi32>
    %27 = arith.extui %26 : vector<1x256xi1> to vector<1x256xi32>
    %28 = arith.sitofp %27 : vector<1x256xi32> to vector<1x256xf32>
    %c255_i32 = arith.constant 255 : i32
    %29 = tpu.dynamic_rotate %3 by %c255_i32 dim 1 : vector<8x256xf32>, i32 -> vector<8x256xf32>
    %c240_i32_6 = arith.constant 240 : i32
    %30 = tpu.dynamic_rotate %3 by %c240_i32_6 dim 1 : vector<8x256xf32>, i32 -> vector<8x256xf32>
    %31 = arith.subf %29, %3 : vector<8x256xf32>
    %32 = vector.broadcast %24 : vector<1x256xf32> to vector<8x256xf32>
    %33 = arith.mulf %31, %32 : vector<8x256xf32>
    %34 = arith.subf %30, %3 : vector<8x256xf32>
    %35 = vector.broadcast %28 : vector<1x256xf32> to vector<8x256xf32>
    %36 = arith.mulf %34, %35 : vector<8x256xf32>
    %c0_7 = arith.constant 0 : index
    %c0_8 = arith.constant 0 : index
    %37 = vector.load %arg3[%c0_7, %c0_8] : memref<8x256xf32, #tpu.memory_space<vmem>>, vector<8x256xf32>
    %38 = arith.mulf %36, %36 : vector<8x256xf32>
    %39 = arith.addf %37, %38 : vector<8x256xf32>
    %c0_9 = arith.constant 0 : index
    %c0_10 = arith.constant 0 : index
    %40 = vector.load %arg3[%c0_9, %c0_10] : memref<8x256xf32, #tpu.memory_space<vmem>>, vector<8x256xf32>
    tpu.vector_store %arg3[%c0_9, %c0_10], %39 {strides = array<i32>} : memref<8x256xf32, #tpu.memory_space<vmem>>, vector<8x256xf32>,
    %c0_11 = arith.constant 0 : index
    %c0_12 = arith.constant 0 : index
    %41 = vector.load %arg4[%c0_11, %c0_12] : memref<8x256xf32, #tpu.memory_space<vmem>>, vector<8x256xf32>
    %42 = arith.mulf %33, %33 : vector<8x256xf32>
    %43 = arith.addf %41, %42 : vector<8x256xf32>
    %c0_13 = arith.constant 0 : index
    %c0_14 = arith.constant 0 : index
    %44 = vector.load %arg4[%c0_13, %c0_14] : memref<8x256xf32, #tpu.memory_space<vmem>>, vector<8x256xf32>
    tpu.vector_store %arg4[%c0_13, %c0_14], %43 {strides = array<i32>} : memref<8x256xf32, #tpu.memory_space<vmem>>, vector<8x256xf32>,
    return
  }
  func.func @transform_0(%arg0: i32, %arg1: i32) -> (i32, i32) {
    %c1_i32 = arith.constant 1 : i32
    %0 = arith.muli %arg0, %c1_i32 : i32
    %1 = arith.addi %0, %arg1 : i32
    %c0_i32 = arith.constant 0 : i32
    %c0_i32_0 = arith.constant 0 : i32
    return %1, %c0_i32 : i32, i32
  }
  func.func @transform_1(%arg0: i32, %arg1: i32) -> (i32, i32) {
    %c0_i32 = arith.constant 0 : i32
    %c0_i32_0 = arith.constant 0 : i32
    return %arg0, %c0_i32 : i32, i32
  }
  func.func @transform_2(%arg0: i32, %arg1: i32) -> (i32, i32) {
    %c0_i32 = arith.constant 0 : i32
    %c0_i32_0 = arith.constant 0 : i32
    return %arg0, %c0_i32 : i32, i32
  }
}

</mosaic_0001>

<llo_original>
// kernel: tpu_custom_call.1
$region0: #{tpu_custom_call.1}
  #allocation0 [shape = 'u32[]', space=smem, size = 0x4, offset = 0x4, fixed_abs, tag = 'smem constant byte address 0x4 - core index']
  #allocation1 [shape = 'u32[72,128]{1,0:T(1,128)}', space=vmem, size = 0x9000, scoped, tag = 'internal scratch']
  %s0 = inlined_call_operand.hbm [shape: f32[8,256], index: 0, kind: input, shape index: {}]
  %s1 = inlined_call_operand.hbm [shape: f32[8,256], index: 1, kind: output, shape index: {0}]
  %s2 = inlined_call_operand.hbm [shape: f32[8,256], index: 2, kind: output, shape index: {1}]
  %3 = xla_tuple %s1, %s2
  %s4 = sld [smem:[#allocation0]]
  $region30: #{tpu_custom_call.1} parent=0
    _
  %s6 = ssub.s32 1, %s4
  %s7 = scalar_select 0, %s6, %s4
  $region1: #{tpu_custom_call.1} parent=0
    #allocation2 [shape = 'u8[8192]{0}', space=vmem, size = 0x2000, scoped, tag = 'input window, operand 0, single buffered']
    #allocation3 [shape = 's32[1]{0}', space=sflag, size = 0x4, scoped, tag = 'scoped memory for tpu_custom_call.1']
    #allocation4 [shape = 's32[1]{0}', space=sflag, size = 0x4, scoped, tag = 'scoped memory for tpu_custom_call.1']
    #allocation5 [shape = 'u8[8192]{0}', space=vmem, size = 0x2000, scoped, tag = 'output window, operand 0, single buffered']
    #allocation6 [shape = 'u8[8192]{0}', space=vmem, size = 0x2000, scoped, tag = 'output window, operand 1, single buffered']
    #allocation7 [shape = 's32[1]{0}', space=sflag, size = 0x4, scoped, tag = 'scoped memory for tpu_custom_call.1']
    %8 = vsyncpa [#allocation3], 0
    %9 = vsyncpa [#allocation4], 0
    %10 = vsyncpa [#allocation7], 0
    // Predicated region
    $region2: #{tpu_custom_call.1} parent=1 // pred_check
      _
    $region3: #{tpu_custom_call.1} parent=1 // pred_check_branch
      %12 = sbr.rel (0) target = $region5
    $region4: #{tpu_custom_call.1} parent=1 // pred_region
      %s13 = sadd.s32 0, 0
      %15 = vsyncadd [#allocation3], 0
      %s16 = smul.addr %s13, 2
      %s17 = smul.addr %s16, 8
      %s18 = scalar_lea.hbm %s0, %s17
      %s20 = sshll.u32 %s18, 4
      %s21 = int_to_ptr.hbm [resolvable:$true] %s20
      %s22 = sshll.u32 [#allocation2], 4
      %s23 = int_to_ptr.vmem [resolvable:$true] %s22
      %25 = dma.hbm_to_vmem [thread:$0]  %s21, 256, %s23, [#allocation3]
    $region5: #{tpu_custom_call.1} parent=1 // pred_fallthru
      _
    // Predicated region
    $region6: #{tpu_custom_call.1} parent=1 // pred_check
      _
    $region7: #{tpu_custom_call.1} parent=1 // pred_check_branch
      %27 = sbr.rel (0) target = $region9
    $region8: #{tpu_custom_call.1} parent=1 // pred_region
      %29 = dma.done [#allocation3], 256
    $region9: #{tpu_custom_call.1} parent=1 // pred_fallthru
      _
    %s30 = sadd.s32 0, 0
    %p31 = scmp.eq.s32.totalorder 0, 0
    // Predicated region
    $region10: #{tpu_custom_call.1} parent=1 // pred_check
      %p32 = pneg %p31
    $region11: #{tpu_custom_call.1} parent=1 // pred_check_branch
      %34 = sbr.rel (%p32) target = $region13
    $region12: #{tpu_custom_call.1} parent=1 // pred_region
      %35 = vst [vmem:[#allocation5] sm:$0xff] 0.0
      %36 = vst [vmem:[#allocation5 + $0x8] sm:$0xff] 0.0
      %37 = vst [vmem:[#allocation6] sm:$0xff] 0.0
      %38 = vst [vmem:[#allocation6 + $0x8] sm:$0xff] 0.0
    $region13: #{tpu_custom_call.1} parent=1 // pred_fallthru
      _
    %v39 = vld [vmem:[#allocation2] sm:$0xff]
    %v40 = vld [vmem:[#allocation2 + $0x8] sm:$0xff]
    %v41 = vlaneseq
    %v42 = vand.u32 %v41, 127
    %v43 = vadd.s32 %v42, 128
    %vm44 = vcmp.lt.s32.totalorder %v42, 0
    %v45 = vsub.s32 0, %v42
    %v46 = vsel %vm44, %v45, %v42
    %v47 = vshrl.u32 %v46, 4
    %v48 = vand.u32 %v46, 15
    %v49 = vsub.s32 0, %v48
    %v50 = vsel %vm44, %v49, %v48
    %vm51 = vcmp.lt.s32.totalorder %v43, 0
    %v52 = vsub.s32 0, %v43
    %v53 = vsel %vm51, %v52, %v43
    %v54 = vshrl.u32 %v53, 4
    %v55 = vand.u32 %v53, 15
    %v56 = vsub.s32 0, %v55
    %v57 = vsel %vm51, %v56, %v55
    %vm58 = vcmp.ne.s32.totalorder %v50, 0
    %vm59 = vcmp.ne.s32.totalorder %v57, 0
    %vm60 = vcmp.lt.s32.totalorder %v50, 0
    %vm61 = vcmp.lt.s32.totalorder %v57, 0
    %vm62 = vmand %vm60, %vm58
    %vm63 = vmand %vm61, %vm59
    %v64 = vadd.s32 %v50, 16
    %v65 = vadd.s32 %v57, 16
    %v66 = vsel %vm62, %v64, %v50
    %v67 = vsel %vm63, %v65, %v57
    %vm68 = vcmp.ne.s32.totalorder %v66, 15
    %vm69 = vcmp.ne.s32.totalorder %v67, 15
    %v70 = vsel %vm68, 1, 0
    %v71 = vsel %vm69, 1, 0
    %v72 = vcvt.s32.f32 %v70
    %v73 = vcvt.s32.f32 %v71
    %vm74 = vcmp.lt.s32.totalorder %v42, 240
    %vm75 = vcmp.lt.s32.totalorder %v43, 240
    %v76 = vsel %vm74, 1, 0
    %v77 = vsel %vm75, 1, 0
    %v78 = vcvt.s32.f32 %v76
    %v79 = vcvt.s32.f32 %v77
    %80 = vrot.lane.b32.xlu0 %v39, 127
    %v81 = vpop.permute.xlu0 %80
    %82 = vrot.lane.b32.xlu0 %v40, 127
    %v83 = vpop.permute.xlu0 %82
    %vm84 = vcmp.lt.s32.totalorder %v42, 127
    %v85 = vsel %vm84, %v81, %v83
    %v86 = vsel %vm84, %v83, %v81
    %87 = vrot.lane.b32.xlu0 %v39, 112
    %v88 = vpop.permute.xlu0 %87
    %89 = vrot.lane.b32.xlu0 %v40, 112
    %v90 = vpop.permute.xlu0 %89
    %vm91 = vcmp.lt.s32.totalorder %v42, 112
    %v92 = vsel %vm91, %v88, %v90
    %v93 = vsel %vm91, %v90, %v88
    %v94 = vsub.f32 %v85, %v39
    %v95 = vsub.f32 %v86, %v40
    %v96 = vmul.f32 %v94, %v72
    %v97 = vmul.f32 %v95, %v73
    %v98 = vsub.f32 %v92, %v39
    %v99 = vsub.f32 %v93, %v40
    %v100 = vmul.f32 %v98, %v78
    %v101 = vmul.f32 %v99, %v79
    %v102 = vld [vmem:[#allocation5] sm:$0xff]
    %v103 = vld [vmem:[#allocation5 + $0x8] sm:$0xff]
    %v104 = vmul.f32 %v100, %v100
    %v105 = vmul.f32 %v101, %v101
    %v106 = vadd.f32 %v102, %v104
    %v107 = vadd.f32 %v103, %v105
    %108 = vst [vmem:[#allocation5] sm:$0xff] %v106
    %109 = vst [vmem:[#allocation5 + $0x8] sm:$0xff] %v107
    %v110 = vld [vmem:[#allocation6] sm:$0xff]
    %v111 = vld [vmem:[#allocation6 + $0x8] sm:$0xff]
    %v112 = vmul.f32 %v96, %v96
    %v113 = vmul.f32 %v97, %v97
    %v114 = vadd.f32 %v110, %v112
    %v115 = vadd.f32 %v111, %v113
    %116 = vst [vmem:[#allocation6] sm:$0xff] %v114
    %117 = vst [vmem:[#allocation6 + $0x8] sm:$0xff] %v115
    // Predicated region
    $region14: #{tpu_custom_call.1} parent=1 // pred_check
      _
    $region15: #{tpu_custom_call.1} parent=1 // pred_check_branch
      %119 = sbr.rel (0) target = $region17
    $region16: #{tpu_custom_call.1} parent=1 // pred_region
      %121 = vsyncadd [#allocation4], 0
      %s123 = sshll.u32 [#allocation5], 4
      %s124 = int_to_ptr.vmem [resolvable:$true] %s123
      %s125 = sshll.u32 %s1, 4
      %s126 = int_to_ptr.hbm [resolvable:$true] %s125
      %128 = dma.vmem_to_hbm [thread:$0]  %s124, 256, %s126, [#allocation4]
    $region17: #{tpu_custom_call.1} parent=1 // pred_fallthru
      _
    // Predicated region
    $region18: #{tpu_custom_call.1} parent=1 // pred_check
      _
    $region19: #{tpu_custom_call.1} parent=1 // pred_check_branch
      %130 = sbr.rel (0) target = $region21
    $region20: #{tpu_custom_call.1} parent=1 // pred_region
      %132 = vsyncadd [#allocation7], 0
      %s134 = sshll.u32 [#allocation6], 4
      %s135 = int_to_ptr.vmem [resolvable:$true] %s134
      %s136 = sshll.u32 %s2, 4
      %s137 = int_to_ptr.hbm [resolvable:$true] %s136
      %139 = dma.vmem_to_hbm [thread:$0]  %s135, 256, %s137, [#allocation7]
    $region21: #{tpu_custom_call.1} parent=1 // pred_fallthru
      _
    // Predicated region
    $region22: #{tpu_custom_call.1} parent=1 // pred_check
      _
    $region23: #{tpu_custom_call.1} parent=1 // pred_check_branch
      %141 = sbr.rel (0) target = $region25
    $region24: #{tpu_custom_call.1} parent=1 // pred_region
      %143 = dma.done [#allocation4], 256
    $region25: #{tpu_custom_call.1} parent=1 // pred_fallthru
      _
    // Predicated region
    $region26: #{tpu_custom_call.1} parent=1 // pred_check
      _
    $region27: #{tpu_custom_call.1} parent=1 // pred_check_branch
      %145 = sbr.rel (0) target = $region29
    $region28: #{tpu_custom_call.1} parent=1 // pred_region
      %147 = dma.done [#allocation7], 256
    $region29: #{tpu_custom_call.1} parent=1 // pred_fallthru
      _
    %148 = vsyncpa [#allocation3], 1
    %149 = vsyncpa [#allocation4], 1
    %150 = vsyncpa [#allocation7], 1

</llo_original>
